<compile_context>
chip_gen: v7x
topology: tpu7x:2x2x1
jax: 0.10.0
libtpu: 0.0.40
codegen_flags: <defaults>
</compile_context>

<pallas_src>
import jax
import jax.numpy as jnp
from jax.experimental import pallas as pl
from jax.experimental.pallas import tpu as pltpu


def attn_pool_kernel(nv_ref, h_ref, w1_ref, b1_ref, w2_ref, b2_ref,
                     pooled_ref, weights_ref):
    TB, S, D = h_ref.shape
    h = h_ref[...]                                            # (TB, S, D)

    # ---- attention MLP -------------------------------------------------
    # First Linear on the merged (TB*S, D) slab -> big MXU M dimension.
    h2 = h.reshape(TB * S, D)
    z = jnp.tanh(
        jnp.dot(h2, w1_ref[...], preferred_element_type=jnp.float32)
        + b1_ref[...]
    )                                                         # (TB*S, D)

    # Second Linear has output width 1: VPU multiply + lane reduce instead of
    # an N=1 MXU matmul.  w2_ref is a (1, D) row.
    z3 = z.reshape(TB, S, D)
    scores = jnp.sum(z3 * w2_ref[...], axis=-1) + b2_ref[0, 0]  # (TB, S) lane-major

    # ---- masked softmax over the verse axis (last axis, lane-dense) ----
    nvec = nv_ref[...]                                        # (TB, 1) int32
    idx = jax.lax.broadcasted_iota(jnp.int32, (TB, S), 1)
    valid = idx < nvec                                        # (TB, S)
    scores = jnp.where(valid, scores, jnp.float32(-1e30))
    m = jnp.max(scores, axis=-1, keepdims=True)               # (TB, 1)
    e = jnp.where(valid, jnp.exp(scores - m), jnp.float32(0.0))
    denom = jnp.sum(e, axis=-1, keepdims=True)                # (TB, 1)
    denom = jnp.maximum(denom, jnp.float32(1e-30))            # guard n == 0
    w = e * pl.reciprocal(denom, approx=False)                # (TB, S)

    # ---- outputs (lane-dense blocks) ------------------------------------
    weights_ref[...] = w                                      # (TB, S)
    pooled_ref[...] = jnp.sum(h * w[:, :, None], axis=1)      # (TB, D)


def attention_pooling(H, num_verses, w1, b1, w2, b2, *, tb=None):
    """Returns (pooled (B, D) f32, attn_weights_padded (B, S, 1) f32)."""
    B, S, D = H.shape

    # Batch-tile size: whole batch when small, otherwise a sublane-friendly 64.
    if tb is None:
        tb = B if B <= 64 else 64
    B_pad = ((B + tb - 1) // tb) * tb
    if B_pad != B:
        H = jnp.pad(H, ((0, B_pad - B), (0, 0), (0, 0)))
        num_verses = jnp.pad(num_verses, (0, B_pad - B))      # padded rows -> n=0

    nv2 = num_verses.astype(jnp.int32).reshape(B_pad, 1)
    w2_row = w2.reshape(1, D)                                 # (D,1) -> (1,D) row

    pooled, weights = pl.pallas_call(
        attn_pool_kernel,
        out_shape=(
            jax.ShapeDtypeStruct((B_pad, D), jnp.float32),
            jax.ShapeDtypeStruct((B_pad, S), jnp.float32),
        ),
        grid=(B_pad // tb,),
        in_specs=[
            pl.BlockSpec((tb, 1), lambda i: (i, 0)),          # num_verses
            pl.BlockSpec((tb, S, D), lambda i: (i, 0, 0)),    # H tile
            pl.BlockSpec((D, D), lambda i: (0, 0)),           # w1 (invariant)
            pl.BlockSpec((1, D), lambda i: (0, 0)),           # b1 (invariant)
            pl.BlockSpec((1, D), lambda i: (0, 0)),           # w2 row (invariant)
            pl.BlockSpec((1, 1), lambda i: (0, 0)),           # b2 (invariant)
        ],
        out_specs=[
            pl.BlockSpec((tb, D), lambda i: (i, 0)),          # pooled, lane-dense
            pl.BlockSpec((tb, S), lambda i: (i, 0)),          # weights, lane-dense
        ],
        compiler_params=pltpu.CompilerParams(
            dimension_semantics=("parallel",),                # batch tiles independent
        ),
    )(nv2, H, w1, b1, w2_row, b2)

    pooled = pooled[:B]
    weights = weights[:B, :, None]                            # back to (B, S, 1)
    return pooled, weights


def reference(H, num_verses, w1, b1, w2, b2):
    # pure-JAX replica of the PyTorch forward (per-batch python loop)
    B = H.shape[0]
    pooled, weights_list = [], []
    for i in range(B):
        n = int(num_verses[i])
        verses = H[i, :n]
        s = jnp.tanh(verses @ w1 + b1) @ w2 + b2[0, 0]
        w = jax.nn.softmax(s, axis=0)
        pooled.append((verses * w).sum(axis=0))
        weights_list.append(w)
    return jnp.stack(pooled, axis=0), weights_list


if __name__ == "__main__":
    B, S, D = 4, 8, 32   # batch, max verses per batch, hidden size

    key = jax.random.PRNGKey(0)
    k_h, k_w1, k_b1, k_w2, k_b2 = jax.random.split(key, 5)

    H = jax.random.normal(k_h, (B, S, D), dtype=jnp.float32)
    num_verses = jnp.array([5, 8, 1, 3], dtype=jnp.int32)

    # deterministic synthetic parameters (shapes from nn.Linear(D, D), nn.Linear(D, 1))
    w1 = jax.random.normal(k_w1, (D, D), dtype=jnp.float32) * 0.1
    b1 = jax.random.normal(k_b1, (1, D), dtype=jnp.float32) * 0.1
    w2 = jax.random.normal(k_w2, (D, 1), dtype=jnp.float32) * 0.1
    b2 = jax.random.normal(k_b2, (1, 1), dtype=jnp.float32) * 0.1

    pooled, weights_padded = attention_pooling(H, num_verses, w1, b1, w2, b2)
    pooled = jax.block_until_ready(pooled)
    weights_padded = jax.block_until_ready(weights_padded)

    # glue: recover the PyTorch-style list of variable-length weight tensors
    all_attn_weights = [weights_padded[i, : int(num_verses[i])] for i in range(B)]

    # correctness check against a pure-JAX reference of the torch forward
    pooled_ref, weights_ref_list = reference(H, num_verses, w1, b1, w2, b2)
    assert jnp.allclose(pooled, pooled_ref, atol=1e-5, rtol=1e-5)
    for got, exp in zip(all_attn_weights, weights_ref_list):
        assert got.shape == exp.shape
        assert jnp.allclose(got, exp, atol=1e-5, rtol=1e-5)

    print("KERNEL_OK")
</pallas_src>

<mosaic_0001>
module attributes {stable_mosaic.version = 11 : i64} {
  func.func @attn_pool_kernel(%arg0: i32, %arg1: memref<4x1xi32, #tpu.memory_space<vmem>>, %arg2: memref<4x8x32xf32, #tpu.memory_space<vmem>>, %arg3: memref<32x32xf32, #tpu.memory_space<vmem>>, %arg4: memref<1x32xf32, #tpu.memory_space<vmem>>, %arg5: memref<1x32xf32, #tpu.memory_space<vmem>>, %arg6: memref<1x1xf32, #tpu.memory_space<vmem>>, %arg7: memref<4x32xf32, #tpu.memory_space<vmem>>, %arg8: memref<4x8xf32, #tpu.memory_space<vmem>>) attributes {dimension_semantics = [#tpu.dimension_semantics<parallel>], iteration_bounds = array<i64: 1>, scalar_prefetch = 0 : i64, scratch_operands = 0 : i64, tpu.core_type = #tpu.core_type<tc>, window_params = [{transform_indices = @transform_0, window_bounds = array<i64: 4, 1>}, {transform_indices = @transform_1, window_bounds = array<i64: 4, 8, 32>}, {pipeline_mode = #tpu.pipeline_mode<synchronous>, transform_indices = @transform_2, window_bounds = array<i64: 32, 32>}, {pipeline_mode = #tpu.pipeline_mode<synchronous>, transform_indices = @transform_3, window_bounds = array<i64: 1, 32>}, {pipeline_mode = #tpu.pipeline_mode<synchronous>, transform_indices = @transform_4, window_bounds = array<i64: 1, 32>}, {pipeline_mode = #tpu.pipeline_mode<synchronous>, transform_indices = @transform_5, window_bounds = array<i64: 1, 1>}, {transform_indices = @transform_6, window_bounds = array<i64: 4, 32>}, {transform_indices = @transform_7, window_bounds = array<i64: 4, 8>}]} {
    %c0 = arith.constant 0 : index
    %c0_0 = arith.constant 0 : index
    %c0_1 = arith.constant 0 : index
    %0 = vector.load %arg2[%c0, %c0_0, %c0_1] : memref<4x8x32xf32, #tpu.memory_space<vmem>>, vector<4x8x32xf32>
    %1 = vector.shape_cast %0 : vector<4x8x32xf32> to vector<32x32xf32>
    %c0_2 = arith.constant 0 : index
    %c0_3 = arith.constant 0 : index
    %2 = vector.load %arg3[%c0_2, %c0_3] : memref<32x32xf32, #tpu.memory_space<vmem>>, vector<32x32xf32>
    %cst = arith.constant dense<0.000000e+00> : vector<32x32xf32>
    %3 = tpu.matmul %1, %2, %cst {dimension_numbers = #tpu.dot_dimension_numbers<[1], [0], [0], [1], [0, 0, 1, 1], [], []>} : vector<32x32xf32>, vector<32x32xf32>, vector<32x32xf32> -> vector<32x32xf32>
    %c0_4 = arith.constant 0 : index
    %c0_5 = arith.constant 0 : index
    %4 = vector.load %arg4[%c0_4, %c0_5] : memref<1x32xf32, #tpu.memory_space<vmem>>, vector<1x32xf32>
    %5 = vector.broadcast %4 : vector<1x32xf32> to vector<32x32xf32>
    %6 = arith.addf %3, %5 : vector<32x32xf32>
    %7 = math.tanh %6 : vector<32x32xf32>
    %8 = vector.shape_cast %7 : vector<32x32xf32> to vector<4x8x32xf32>
    %c0_6 = arith.constant 0 : index
    %c0_7 = arith.constant 0 : index
    %9 = vector.load %arg5[%c0_6, %c0_7] : memref<1x32xf32, #tpu.memory_space<vmem>>, vector<1x32xf32>
    %10 = vector.shape_cast %9 : vector<1x32xf32> to vector<1x1x32xf32>
    %11 = vector.broadcast %10 : vector<1x1x32xf32> to vector<4x8x32xf32>
    %12 = arith.mulf %8, %11 : vector<4x8x32xf32>
    %cst_8 = arith.constant dense<0.000000e+00> : vector<4x8xf32>
    %13 = vector.multi_reduction <add>, %12, %cst_8 [2] : vector<4x8x32xf32> to vector<4x8xf32>
    %c0_9 = arith.constant 0 : index
    %c0_10 = arith.constant 0 : index
    %14 = vector.load %arg6[%c0_9, %c0_10] : memref<1x1xf32, #tpu.memory_space<vmem>>, vector<1x1xf32>
    %15 = vector.extract %14[0, 0] : f32 from vector<1x1xf32>
    %16 = vector.broadcast %15 : f32 to vector<4x8xf32>
    %17 = arith.addf %13, %16 : vector<4x8xf32>
    %c0_11 = arith.constant 0 : index
    %c0_12 = arith.constant 0 : index
    %18 = vector.load %arg1[%c0_11, %c0_12] : memref<4x1xi32, #tpu.memory_space<vmem>>, vector<4x1xi32>
    %19 = tpu.iota {dimensions = array<i32: 1>} : vector<4x8xi32>
    %20 = vector.broadcast %18 : vector<4x1xi32> to vector<4x8xi32>
    %21 = arith.cmpi slt, %19, %20 : vector<4x8xi32>
    %cst_13 = arith.constant -1.000000e+30 : f32
    %22 = vector.broadcast %cst_13 : f32 to vector<4x8xf32>
    %23 = arith.select %21, %17, %22 : vector<4x8xi1>, vector<4x8xf32>
    %cst_14 = arith.constant dense<0xFF800000> : vector<4xf32>
    %24 = vector.multi_reduction <maximumf>, %23, %cst_14 [1] : vector<4x8xf32> to vector<4xf32>
    %25 = vector.shape_cast %24 : vector<4xf32> to vector<4x1xf32>
    %26 = vector.broadcast %25 : vector<4x1xf32> to vector<4x8xf32>
    %27 = arith.subf %23, %26 : vector<4x8xf32>
    %28 = math.exp %27 : vector<4x8xf32>
    %cst_15 = arith.constant 0.000000e+00 : f32
    %29 = vector.broadcast %cst_15 : f32 to vector<4x8xf32>
    %30 = arith.select %21, %28, %29 : vector<4x8xi1>, vector<4x8xf32>
    %cst_16 = arith.constant dense<0.000000e+00> : vector<4xf32>
    %31 = vector.multi_reduction <add>, %30, %cst_16 [1] : vector<4x8xf32> to vector<4xf32>
    %32 = vector.shape_cast %31 : vector<4xf32> to vector<4x1xf32>
    %cst_17 = arith.constant 1.000000e-30 : f32
    %33 = vector.broadcast %cst_17 : f32 to vector<4x1xf32>
    %34 = arith.maximumf %32, %33 : vector<4x1xf32>
    %35 = tpu.reciprocal %34 : vector<4x1xf32> -> vector<4x1xf32>
    %36 = vector.broadcast %35 : vector<4x1xf32> to vector<4x8xf32>
    %37 = arith.mulf %30, %36 : vector<4x8xf32>
    %c0_18 = arith.constant 0 : index
    %c0_19 = arith.constant 0 : index
    %38 = vector.load %arg8[%c0_18, %c0_19] : memref<4x8xf32, #tpu.memory_space<vmem>>, vector<4x8xf32>
    tpu.vector_store %arg8[%c0_18, %c0_19], %37 {strides = array<i32>} : memref<4x8xf32, #tpu.memory_space<vmem>>, vector<4x8xf32>,
    %39 = vector.shape_cast %37 : vector<4x8xf32> to vector<4x8x1xf32>
    %40 = vector.broadcast %39 : vector<4x8x1xf32> to vector<4x8x32xf32>
    %41 = arith.mulf %0, %40 : vector<4x8x32xf32>
    %cst_20 = arith.constant dense<0.000000e+00> : vector<4x32xf32>
    %42 = vector.multi_reduction <add>, %41, %cst_20 [1] : vector<4x8x32xf32> to vector<4x32xf32>
    %c0_21 = arith.constant 0 : index
    %c0_22 = arith.constant 0 : index
    %43 = vector.load %arg7[%c0_21, %c0_22] : memref<4x32xf32, #tpu.memory_space<vmem>>, vector<4x32xf32>
    tpu.vector_store %arg7[%c0_21, %c0_22], %42 {strides = array<i32>} : memref<4x32xf32, #tpu.memory_space<vmem>>, vector<4x32xf32>,
    return
  }
  func.func @transform_0(%arg0: i32) -> (i32, i32) {
    %c0_i32 = arith.constant 0 : i32
    %c0_i32_0 = arith.constant 0 : i32
    return %arg0, %c0_i32 : i32, i32
  }
  func.func @transform_1(%arg0: i32) -> (i32, i32, i32) {
    %c0_i32 = arith.constant 0 : i32
    %c0_i32_0 = arith.constant 0 : i32
    %c0_i32_1 = arith.constant 0 : i32
    return %arg0, %c0_i32, %c0_i32_0 : i32, i32, i32
  }
  func.func @transform_2(%arg0: i32) -> (i32, i32) {
    %c0_i32 = arith.constant 0 : i32
    %c0_i32_0 = arith.constant 0 : i32
    %c0_i32_1 = arith.constant 0 : i32
    return %c0_i32, %c0_i32_0 : i32, i32
  }
  func.func @transform_3(%arg0: i32) -> (i32, i32) {
    %c0_i32 = arith.constant 0 : i32
    %c0_i32_0 = arith.constant 0 : i32
    %c0_i32_1 = arith.constant 0 : i32
    return %c0_i32, %c0_i32_0 : i32, i32
  }
  func.func @transform_4(%arg0: i32) -> (i32, i32) {
    %c0_i32 = arith.constant 0 : i32
    %c0_i32_0 = arith.constant 0 : i32
    %c0_i32_1 = arith.constant 0 : i32
    return %c0_i32, %c0_i32_0 : i32, i32
  }
  func.func @transform_5(%arg0: i32) -> (i32, i32) {
    %c0_i32 = arith.constant 0 : i32
    %c0_i32_0 = arith.constant 0 : i32
    %c0_i32_1 = arith.constant 0 : i32
    return %c0_i32, %c0_i32_0 : i32, i32
  }
  func.func @transform_6(%arg0: i32) -> (i32, i32) {
    %c0_i32 = arith.constant 0 : i32
    %c0_i32_0 = arith.constant 0 : i32
    return %arg0, %c0_i32 : i32, i32
  }
  func.func @transform_7(%arg0: i32) -> (i32, i32) {
    %c0_i32 = arith.constant 0 : i32
    %c0_i32_0 = arith.constant 0 : i32
    return %arg0, %c0_i32 : i32, i32
  }
}

</mosaic_0001>

<llo_original>
// kernel: tpu_custom_call.1
$region0: #{tpu_custom_call.1}
  #allocation0 [shape = 'u32[]', space=smem, size = 0x4, offset = 0x4, fixed_abs, tag = 'smem constant byte address 0x4 - core index']
  #allocation1 [shape = 'u32[144,128]{1,0:T(1,128)}', space=vmem, size = 0x12000, scoped, tag = 'internal scratch']
  #allocation2 [shape = 'f32[1,1]{1,0:T(1,128)S(1)}', space=vmem, size = 0x200, scoped, tag = 'scoped memory for tpu_custom_call.1']
  %s0 = inlined_call_operand.vmem [shape: s32[4,1], index: 0, kind: input, shape index: {}]
  %s1 = inlined_call_operand.hbm [shape: f32[4,8,32], index: 1, kind: input, shape index: {}]
  %s2 = inlined_call_operand.hbm [shape: f32[32,32], index: 2, kind: input, shape index: {}]
  %s3 = inlined_call_operand.vmem [shape: f32[1,32], index: 3, kind: input, shape index: {}]
  %s4 = inlined_call_operand.vmem [shape: f32[1,32], index: 4, kind: input, shape index: {}]
  %s5 = inlined_call_operand.<no memory space> [shape: f32[1,1], index: 5, kind: input, shape index: {}]
  %s6 = inlined_call_operand.hbm [shape: f32[4,32], index: 6, kind: output, shape index: {0}]
  %s7 = inlined_call_operand.hbm [shape: f32[4,8], index: 7, kind: output, shape index: {1}]
  %8 = xla_tuple %s6, %s7
  %s9 = sld [smem:[#allocation0]]
  $region50: #{tpu_custom_call.1} parent=0
    _
  %s11 = ssub.s32 1, %s9
  %s12 = scalar_select 0, %s11, %s9
  %v13 = vstv %s5
  %14 = vst [vmem:[#allocation2] sm:$0x1] %v13
  $region1: #{tpu_custom_call.1} parent=0
    #allocation3 [shape = 'u8[16384]{0}', space=vmem, size = 0x4000, scoped, tag = 'input window, operand 1, single buffered']
    #allocation4 [shape = 's32[1]{0}', space=sflag, size = 0x4, scoped, tag = 'scoped memory for tpu_custom_call.1']
    #allocation5 [shape = 's32[1]{0}', space=sflag, size = 0x4, scoped, tag = 'scoped memory for tpu_custom_call.1']
    #allocation6 [shape = 'u8[16384]{0}', space=vmem, size = 0x4000, scoped, tag = 'input window, operand 2, single buffered']
    #allocation7 [shape = 's32[1]{0}', space=sflag, size = 0x4, scoped, tag = 'scoped memory for tpu_custom_call.1']
    #allocation8 [shape = 'u8[2048]{0}', space=vmem, size = 0x800, scoped, tag = 'output window, operand 0, single buffered']
    #allocation9 [shape = 'u8[2048]{0}', space=vmem, size = 0x800, scoped, tag = 'output window, operand 1, single buffered']
    #allocation10 [shape = 's32[1]{0}', space=sflag, size = 0x4, scoped, tag = 'scoped memory for tpu_custom_call.1']
    %15 = vsyncpa [#allocation4], 0
    %16 = vsyncpa [#allocation7], 0
    %17 = vsyncpa [#allocation5], 0
    %18 = vsyncpa [#allocation10], 0
    // Predicated region
    $region2: #{tpu_custom_call.1} parent=1 // pred_check
      _
    $region3: #{tpu_custom_call.1} parent=1 // pred_check_branch
      %20 = sbr.rel (0) target = $region5
    $region4: #{tpu_custom_call.1} parent=1 // pred_region
      _
    $region5: #{tpu_custom_call.1} parent=1 // pred_fallthru
      _
    // Predicated region
    $region6: #{tpu_custom_call.1} parent=1 // pred_check
      _
    $region7: #{tpu_custom_call.1} parent=1 // pred_check_branch
      %22 = sbr.rel (0) target = $region9
    $region8: #{tpu_custom_call.1} parent=1 // pred_region
      %s24 = ssub.s32 512, 512
      %25 = vsyncadd [#allocation4], %s24
      %s26 = sshll.u32 [#allocation3], 4
      %s27 = int_to_ptr.vmem [resolvable:$true] %s26
      %32 = dma.hbm_to_vmem [thread:$0]  %s1, 512, %s27, [#allocation4], 128, 128, 8
    $region9: #{tpu_custom_call.1} parent=1 // pred_fallthru
      _
    // Predicated region
    $region10: #{tpu_custom_call.1} parent=1 // pred_check
      _
    $region11: #{tpu_custom_call.1} parent=1 // pred_check_branch
      %34 = sbr.rel (0) target = $region13
    $region12: #{tpu_custom_call.1} parent=1 // pred_region
      %s36 = ssub.s32 512, 512
      %37 = vsyncadd [#allocation7], %s36
      %s38 = sshll.u32 [#allocation6], 4
      %s39 = int_to_ptr.vmem [resolvable:$true] %s38
      %44 = dma.hbm_to_vmem [thread:$0]  %s2, 512, %s39, [#allocation7], 128, 128, 8
    $region13: #{tpu_custom_call.1} parent=1 // pred_fallthru
      _
    // Predicated region
    $region14: #{tpu_custom_call.1} parent=1 // pred_check
      _
    $region15: #{tpu_custom_call.1} parent=1 // pred_check_branch
      %46 = sbr.rel (0) target = $region17
    $region16: #{tpu_custom_call.1} parent=1 // pred_region
      _
    $region17: #{tpu_custom_call.1} parent=1 // pred_fallthru
      _
    // Predicated region
    $region18: #{tpu_custom_call.1} parent=1 // pred_check
      _
    $region19: #{tpu_custom_call.1} parent=1 // pred_check_branch
      %48 = sbr.rel (0) target = $region21
    $region20: #{tpu_custom_call.1} parent=1 // pred_region
      _
    $region21: #{tpu_custom_call.1} parent=1 // pred_fallthru
      _
    // Predicated region
    $region22: #{tpu_custom_call.1} parent=1 // pred_check
      _
    $region23: #{tpu_custom_call.1} parent=1 // pred_check_branch
      %50 = sbr.rel (0) target = $region25
    $region24: #{tpu_custom_call.1} parent=1 // pred_region
      _
    $region25: #{tpu_custom_call.1} parent=1 // pred_fallthru
      _
    // Predicated region
    $region26: #{tpu_custom_call.1} parent=1 // pred_check
      _
    $region27: #{tpu_custom_call.1} parent=1 // pred_check_branch
      %52 = sbr.rel (0) target = $region29
    $region28: #{tpu_custom_call.1} parent=1 // pred_region
      %53 = dma.done [#allocation4], 512
    $region29: #{tpu_custom_call.1} parent=1 // pred_fallthru
      _
    // Predicated region
    $region30: #{tpu_custom_call.1} parent=1 // pred_check
      _
    $region31: #{tpu_custom_call.1} parent=1 // pred_check_branch
      %55 = sbr.rel (0) target = $region33
    $region32: #{tpu_custom_call.1} parent=1 // pred_region
      %56 = dma.done [#allocation7], 512
    $region33: #{tpu_custom_call.1} parent=1 // pred_fallthru
      _
    %v57 = vld [vmem:[#allocation3] sm:$0xff]
    %v58 = vld [vmem:[#allocation3 + $0x8] sm:$0xff]
    %v59 = vld [vmem:[#allocation3 + $0x10] sm:$0xff]
    %v60 = vld [vmem:[#allocation3 + $0x18] sm:$0xff]
    %v61 = vld [vmem:[#allocation6] sm:$0xff]
    %v62 = vld [vmem:[#allocation6 + $0x8] sm:$0xff]
    %v63 = vld [vmem:[#allocation6 + $0x10] sm:$0xff]
    %v64 = vld [vmem:[#allocation6 + $0x18] sm:$0xff]
    %v65 = vld [vmem:[%s3] sm:$0x1]
    %v67 = vlaneseq
    %v68 = vshrl.u32 %v67, 7
    %v69 = vsub.s32 0, %v68
    %v70 = vrot.slane %v65, %v69
    %vm72 = vcmask 261120
    %v74 = vsel %vm72, %v57, 0
    %v77 = vsel %vm72, %v58, 0
    %v80 = vsel %vm72, %v59, 0
    %v83 = vsel %vm72, %v60, 0
    %85 = vmatprep.subr.mxu0 0.0
    %86 = vmatpush1.msra.mxu0 %v61
    %87 = vmatprep.subr.mxu0 0.0
    %88 = vmatpush1.msra.mxu0 %v62
    %89 = vmatprep.subr.mxu0 0.0
    %90 = vmatpush1.msra.mxu0 %v63
    %91 = vmatprep.subr.mxu0 0.0
    %92 = vmatpush1.msra.mxu0 %v64
    %93 = vmatprep.subr.mxu0 0.0
    %94 = vmatpush1.msra.mxu0 0.0
    %95 = vmatprep.subr.mxu0 0.0
    %96 = vmatpush1.msra.mxu0 0.0
    %97 = vmatprep.subr.mxu0 0.0
    %98 = vmatpush1.msra.mxu0 0.0
    %99 = vmatprep.subr.mxu0 0.0
    %100 = vmatpush1.msra.mxu0 0.0
    %101 = vmatprep.subr.mxu0 0.0
    %102 = vmatpush1.msra.mxu0 0.0
    %103 = vmatprep.subr.mxu0 0.0
    %104 = vmatpush1.msra.mxu0 0.0
    %105 = vmatprep.subr.mxu0 0.0
    %106 = vmatpush1.msra.mxu0 0.0
    %107 = vmatprep.subr.mxu0 0.0
    %108 = vmatpush1.msra.mxu0 0.0
    %109 = vmatprep.subr.mxu0 0.0
    %110 = vmatpush1.msra.mxu0 0.0
    %111 = vmatprep.subr.mxu0 0.0
    %112 = vmatpush1.msra.mxu0 0.0
    %113 = vmatprep.subr.mxu0 0.0
    %114 = vmatpush1.msra.mxu0 0.0
    %115 = vmatprep.subr.mxu0 0.0
    %116 = vmatpush1.msra.mxu0 0.0
    %117 = vmatprep.subr.mxu0 0.0
    %118 = vmatpush1.msra.mxu0 0.0
    %119 = vmatprep.subr.mxu0 0.0
    %120 = vmatpush1.msra.mxu0 0.0
    %121 = vmatprep.subr.mxu0 0.0
    %122 = vmatpush1.msra.mxu0 0.0
    %123 = vmatprep.subr.mxu0 0.0
    %124 = vmatpush1.msra.mxu0 0.0
    %125 = vmatprep.subr.mxu0 0.0
    %126 = vmatpush1.msra.mxu0 0.0
    %127 = vmatprep.subr.mxu0 0.0
    %128 = vmatpush1.msra.mxu0 0.0
    %129 = vmatprep.subr.mxu0 0.0
    %130 = vmatpush1.msra.mxu0 0.0
    %131 = vmatprep.subr.mxu0 0.0
    %132 = vmatpush1.msra.mxu0 0.0
    %133 = vmatprep.subr.mxu0 0.0
    %134 = vmatpush1.msra.mxu0 0.0
    %135 = vmatprep.subr.mxu0 0.0
    %136 = vmatpush1.msra.mxu0 0.0
    %137 = vmatprep.subr.mxu0 0.0
    %138 = vmatpush1.msra.mxu0 0.0
    %139 = vmatprep.subr.mxu0 0.0
    %140 = vmatpush1.msra.mxu0 0.0
    %141 = vmatprep.subr.mxu0 0.0
    %142 = vmatpush1.msra.mxu0 0.0
    %143 = vmatprep.subr.mxu0 0.0
    %144 = vmatpush1.msra.mxu0 0.0
    %145 = vmatprep.subr.mxu0 0.0
    %146 = vmatpush1.msra.mxu0 0.0
    %147 = vmatprep.subr.mxu0 0.0
    %148 = vmatpush1.msra.mxu0 0.0
    %149 = vmatprep.mubr.f32.mxu0 0.0
    %150 = vmatmul.mubr.f32.gmra.mrb[0].mxu0 %v74
    %v151 = vpop.f32.mrb[0].mxu0
    %v152 = vadd.f32 %v70, %v151
    %v153 = vpop.f32.mrb[0].mxu0
    %154 = vmatprep.mubr.f32.mxu0 0.0
    %155 = vmatmul.mubr.f32.gmra.mrb[0].mxu0 %v77
    %v156 = vpop.f32.mrb[0].mxu0
    %v157 = vadd.f32 %v70, %v156
    %v158 = vpop.f32.mrb[0].mxu0
    %159 = vmatprep.mubr.f32.mxu0 0.0
    %160 = vmatmul.mubr.f32.gmra.mrb[0].mxu0 %v80
    %v161 = vpop.f32.mrb[0].mxu0
    %v162 = vadd.f32 %v70, %v161
    %v163 = vpop.f32.mrb[0].mxu0
    %164 = vmatprep.mubr.f32.mxu0 0.0
    %165 = vmatmul.mubr.f32.gmra.mrb[0].mxu0 %v83
    %v166 = vpop.f32.mrb[0].mxu0
    %v167 = vadd.f32 %v70, %v166
    %v168 = vpop.f32.mrb[0].mxu0
    %169 = vdwg.mxu0
    %v170 = vtanh.pop %v152
    %v171 = vtanh.pop %v157
    %v172 = vtanh.pop %v162
    %v173 = vtanh.pop %v167
    %v174 = vld [vmem:[%s4] sm:$0x1]
    %v176 = vlaneseq
    %v177 = vshrl.u32 %v176, 7
    %v178 = vsub.s32 0, %v177
    %v179 = vrot.slane %v174, %v178
    %v181 = vmul.f32 %v170, %v179
    %v182 = vmul.f32 %v171, %v179
    %v183 = vmul.f32 %v172, %v179
    %v184 = vmul.f32 %v173, %v179
    %v185 = vsel %vm72, %v181, 0.0
    %186 = vadd.xlane.f32.xlu0 %v185
    %v187 = vpop.xlane.xlu0 %186
    %v188 = vsel %vm72, %v182, 0.0
    %189 = vadd.xlane.f32.xlu0 %v188
    %v190 = vpop.xlane.xlu0 %189
    %v191 = vsel %vm72, %v183, 0.0
    %192 = vadd.xlane.f32.xlu0 %v191
    %v193 = vpop.xlane.xlu0 %192
    %v194 = vsel %vm72, %v184, 0.0
    %195 = vadd.xlane.f32.xlu0 %v194
    %v196 = vpop.xlane.xlu0 %195
    %v197 = vld [vmem:[#allocation2] sm:$0x1]
    %s198 = vtos %v197
    %v199 = vstv %s198
    %v200 = vadd.f32 %v187, %v199
    %v201 = vadd.f32 %v190, %v199
    %v202 = vadd.f32 %v193, %v199
    %v203 = vadd.f32 %v196, %v199
    %v204 = vld [vmem:[%s0] sm:$0xf]
    %v205 = vlaneseq
    %v206 = vand.u32 %v205, 127
    %207 = vset.pattern.permute.xlu0 0
    %208 = vperm.xlu0 %207, %v204
    %v209 = vpop.permute.xlu0 %208
    %vm210 = vcmp.lt.s32.totalorder %v206, %v209
    %v215 = vlaneseq
    %v216 = vshrl.u32 %v215, 7
    %v217 = vsub.s32 %v206, %v216
    %v218 = vrot.slane %v200, %v217
    %v219 = vlaneseq
    %v220 = vshrl.u32 %v219, 7
    %v221 = vsub.s32 %v206, %v220
    %v222 = vrot.slane %v201, %v221
    %v223 = vlaneseq
    %v224 = vshrl.u32 %v223, 7
    %v225 = vsub.s32 %v206, %v224
    %v226 = vrot.slane %v202, %v225
    %v227 = vlaneseq
    %v228 = vshrl.u32 %v227, 7
    %v229 = vsub.s32 %v206, %v228
    %v230 = vrot.slane %v203, %v229
    %vm231 = vcmask 1041409
    %v232 = vsel %vm231, %v222, %v218
    %vm233 = vcmask 1042434
    %v234 = vsel %vm233, %v226, %v232
    %vm235 = vcmask 1043459
    %v236 = vsel %vm235, %v230, %v234
    %v238 = vsel %vm210, %v236, -1e+30
    %vm239 = vcmask 60416
    %v240 = vsel %vm239, %v238, -inf
    %241 = vmax.xlane.f32.xlu0 %v240
    %v242 = vpop.xlane.xlu0 %241
    %v243 = vsub.f32 %v238, %v242
    %v244 = vmul.f32 %v243, 1.442695
    %v245 = vpow.pop %v244
    %v246 = vsel %vm210, %v245, 0.0
    %v247 = vsel %vm239, %v246, 0.0
    %248 = vadd.xlane.f32.xlu0 %v247
    %v249 = vpop.xlane.xlu0 %248
    %v250 = vmax.f32 %v249, 1e-30
    %v251 = vrcp.pop %v250
    %v252 = vmul.f32 %v246, %v251
    %253 = vst.msk [vmem:[#allocation9] sm:$0xf] %vm239, %v252
    %v254 = vlaneseq
    %v255 = vshrl.u32 %v254, 7
    %v256 = vsub.s32 0, %v255
    %v257 = vrot.slane %v252, %v256
    %259 = vbcast.lane.b32.xlu0 %v257, 256
    %v260 = vpop.permute.xlu0 %259
    %v261 = vlaneseq
    %v262 = vshrl.u32 %v261, 7
    %v263 = vsub.s32 1, %v262
    %v264 = vrot.slane %v252, %v263
    %266 = vbcast.lane.b32.xlu0 %v264, 256
    %v267 = vpop.permute.xlu0 %266
    %v268 = vlaneseq
    %v269 = vshrl.u32 %v268, 7
    %v270 = vsub.s32 2, %v269
    %v271 = vrot.slane %v252, %v270
    %273 = vbcast.lane.b32.xlu0 %v271, 256
    %v274 = vpop.permute.xlu0 %273
    %v275 = vlaneseq
    %v276 = vshrl.u32 %v275, 7
    %v277 = vsub.s32 3, %v276
    %v278 = vrot.slane %v252, %v277
    %280 = vbcast.lane.b32.xlu0 %v278, 256
    %v281 = vpop.permute.xlu0 %280
    %v282 = vmul.f32 %v57, %v260
    %v283 = vmul.f32 %v58, %v267
    %v284 = vmul.f32 %v59, %v274
    %v285 = vmul.f32 %v60, %v281
    %v286 = vsel %vm72, %v282, 0.0
    %v287 = vrot.slane %v286, 4
    %v288 = vadd.f32 %v286, %v287
    %v289 = vrot.slane %v288, 2
    %v290 = vadd.f32 %v288, %v289
    %v291 = vrot.slane %v290, 1
    %v292 = vadd.f32 %v290, %v291
    %v293 = vsel %vm72, %v283, 0.0
    %v294 = vrot.slane %v293, 4
    %v295 = vadd.f32 %v293, %v294
    %v296 = vrot.slane %v295, 2
    %v297 = vadd.f32 %v295, %v296
    %v298 = vrot.slane %v297, 1
    %v299 = vadd.f32 %v297, %v298
    %v300 = vsel %vm72, %v284, 0.0
    %v301 = vrot.slane %v300, 4
    %v302 = vadd.f32 %v300, %v301
    %v303 = vrot.slane %v302, 2
    %v304 = vadd.f32 %v302, %v303
    %v305 = vrot.slane %v304, 1
    %v306 = vadd.f32 %v304, %v305
    %v307 = vsel %vm72, %v285, 0.0
    %v308 = vrot.slane %v307, 4
    %v309 = vadd.f32 %v307, %v308
    %v310 = vrot.slane %v309, 2
    %v311 = vadd.f32 %v309, %v310
    %v312 = vrot.slane %v311, 1
    %v313 = vadd.f32 %v311, %v312
    %v318 = vsel %vm231, %v299, %v292
    %v319 = vsel %vm233, %v306, %v318
    %v320 = vsel %vm235, %v313, %v319
    %vm322 = vcmask 257024
    %323 = vst.msk [vmem:[#allocation8] sm:$0xf] %vm322, %v320
    // Predicated region
    $region34: #{tpu_custom_call.1} parent=1 // pred_check
      _
    $region35: #{tpu_custom_call.1} parent=1 // pred_check_branch
      %325 = sbr.rel (0) target = $region37
    $region36: #{tpu_custom_call.1} parent=1 // pred_region
      %s327 = ssub.s32 64, 64
      %328 = vsyncadd [#allocation5], %s327
      %s330 = sshll.u32 [#allocation8], 4
      %s331 = int_to_ptr.vmem [resolvable:$true] %s330
      %333 = dma.vmem_to_hbm [thread:$0]  %s331, 64, %s6, [#allocation5]
    $region37: #{tpu_custom_call.1} parent=1 // pred_fallthru
      _
    // Predicated region
    $region38: #{tpu_custom_call.1} parent=1 // pred_check
      _
    $region39: #{tpu_custom_call.1} parent=1 // pred_check_branch
      %335 = sbr.rel (0) target = $region41
    $region40: #{tpu_custom_call.1} parent=1 // pred_region
      %s337 = ssub.s32 64, 64
      %338 = vsyncadd [#allocation10], %s337
      %s340 = sshll.u32 [#allocation9], 4
      %s341 = int_to_ptr.vmem [resolvable:$true] %s340
      %343 = dma.vmem_to_hbm [thread:$0]  %s341, 64, %s7, [#allocation10]
    $region41: #{tpu_custom_call.1} parent=1 // pred_fallthru
      _
    // Predicated region
    $region42: #{tpu_custom_call.1} parent=1 // pred_check
      _
    $region43: #{tpu_custom_call.1} parent=1 // pred_check_branch
      %345 = sbr.rel (0) target = $region45
    $region44: #{tpu_custom_call.1} parent=1 // pred_region
      %346 = dma.done [#allocation5], 64
    $region45: #{tpu_custom_call.1} parent=1 // pred_fallthru
      _
    // Predicated region
    $region46: #{tpu_custom_call.1} parent=1 // pred_check
      _
    $region47: #{tpu_custom_call.1} parent=1 // pred_check_branch
      %348 = sbr.rel (0) target = $region49
    $region48: #{tpu_custom_call.1} parent=1 // pred_region
      %349 = dma.done [#allocation10], 64
    $region49: #{tpu_custom_call.1} parent=1 // pred_fallthru
      _
    %350 = vsyncpa [#allocation4], 1
    %351 = vsyncpa [#allocation7], 1
    %352 = vsyncpa [#allocation5], 1
    %353 = vsyncpa [#allocation10], 1

</llo_original>
